<compile_context>
chip_gen: v7x
topology: tpu7x:2x2x1
jax: 0.10.0
libtpu: 0.0.40
codegen_flags: <defaults>
</compile_context>

<pallas_src>
import math

import jax
import jax.numpy as jnp
from jax import lax
from jax.experimental import pallas as pl
from jax.experimental.pallas import tpu as pltpu


# ----------------------------------------------------------------------------
# Kernel A: fused QKV projection  (1, tq, d_model) @ (d_model, 3*inner_dim)
# ----------------------------------------------------------------------------
def _qkv_proj_kernel(x_ref, w_ref, o_ref):
    o_ref[0] = jnp.dot(
        x_ref[0], w_ref[...], preferred_element_type=jnp.float32
    ).astype(o_ref.dtype)


def _qkv_projection(x, w, out_dtype, tq):
    bs, qlen, d_in = x.shape
    d_out = w.shape[1]
    nq = qlen // tq
    return pl.pallas_call(
        _qkv_proj_kernel,
        out_shape=jax.ShapeDtypeStruct((bs, qlen, d_out), out_dtype),
        grid=(bs, nq),
        in_specs=[
            pl.BlockSpec((1, tq, d_in), lambda b, i: (b, i, 0)),
            # Constant index_map -> weight tile fetched once, reused across
            # grid steps (no per-step refetch).
            pl.BlockSpec((d_in, d_out), lambda b, i: (0, 0)),
        ],
        out_specs=pl.BlockSpec((1, tq, d_out), lambda b, i: (b, i, 0)),
        compiler_params=pltpu.CompilerParams(
            dimension_semantics=("parallel", "parallel")),
    )(x, w)


# ----------------------------------------------------------------------------
# Kernel B: fused (all heads) attention + output projection
#   grid = (batch, q_tiles); per step:
#     for each head: scores = q @ k^T (+ bias), f32 softmax, ctx_h = p @ v
#     ctx = concat_h(ctx_h)  (tq, inner_dim)
#     out = ctx @ Wo         (tq, d_model)  -- lane-dense store
# ----------------------------------------------------------------------------
def _attn_oproj_kernel(q_ref, k_ref, v_ref, bias_ref, wo_ref, o_ref):
    n_heads = q_ref.shape[1]
    ctx_heads = []
    for h in range(n_heads):          # static python loop over heads
        q = q_ref[0, h]               # (tq,   d_kv)  bf16
        k = k_ref[0, h]               # (klen, d_kv)  bf16
        v = v_ref[0, h]               # (klen, d_kv)  bf16

        # scores = q @ k^T without an explicit transpose (contract last dims).
        # T5 does NOT scale by 1/sqrt(d_kv).
        s = lax.dot_general(q, k, (((1,), (1,)), ((), ())),
                            preferred_element_type=jnp.float32)
        s = s + bias_ref[h]                                   # f32 bias add

        # float32 softmax (matches F.softmax(scores.float(), dim=-1)).
        s = s - jnp.max(s, axis=-1, keepdims=True)
        e = jnp.exp(s)
        p = e * pl.reciprocal(jnp.sum(e, axis=-1, keepdims=True), approx=True)

        ctx_heads.append(
            jnp.dot(p.astype(v.dtype), v, preferred_element_type=jnp.float32))

    # merge heads in-register, then one K = inner_dim output projection
    ctx = jnp.concatenate(ctx_heads, axis=-1).astype(wo_ref.dtype)  # (tq, inner)
    o_ref[0] = jnp.dot(ctx, wo_ref[...],
                       preferred_element_type=jnp.float32).astype(o_ref.dtype)


def _attention_oproj(qh, kh, vh, bias, wo, out_dtype, tq):
    bs, n_heads, qlen, d_kv = qh.shape
    klen = kh.shape[2]
    inner, d_model = wo.shape
    nq = qlen // tq
    return pl.pallas_call(
        _attn_oproj_kernel,
        out_shape=jax.ShapeDtypeStruct((bs, qlen, d_model), out_dtype),
        grid=(bs, nq),
        in_specs=[
            pl.BlockSpec((1, n_heads, tq, d_kv), lambda b, i: (b, 0, i, 0)),
            pl.BlockSpec((1, n_heads, klen, d_kv), lambda b, i: (b, 0, 0, 0)),
            pl.BlockSpec((1, n_heads, klen, d_kv), lambda b, i: (b, 0, 0, 0)),
            # bias blocked per q-tile (all heads) -> VMEM O(n_heads*tq*klen)
            pl.BlockSpec((n_heads, tq, klen), lambda b, i: (0, i, 0)),
            # Wo fetched once (constant index_map), reused across grid steps
            pl.BlockSpec((inner, d_model), lambda b, i: (0, 0)),
        ],
        out_specs=pl.BlockSpec((1, tq, d_model), lambda b, i: (b, i, 0)),
        compiler_params=pltpu.CompilerParams(
            dimension_semantics=("parallel", "parallel")),
    )(qh, kh, vh, bias, wo)


# ----------------------------------------------------------------------------
# Wrapper: full T5Attention forward (encoder self-attention, eval mode)
# ----------------------------------------------------------------------------
def _pick_q_tile(qlen):
    # cap the q-tile to bound the per-step bias block (n_heads * tq * klen)
    for t in (256, 128):
        if qlen % t == 0:
            return t
    return qlen   # full extent is always a legal block dim


def t5_attention_pallas(x, wq, wk, wv, wo, pos_bias, n_heads,
                        compute_dtype=jnp.bfloat16):
    bs, qlen, d_model = x.shape
    inner_dim = wq.shape[1]
    d_kv = inner_dim // n_heads
    tq = _pick_q_tile(qlen)

    # bf16 matmul operands (f32 accumulation in-kernel); softmax/bias stay f32.
    x_c = x.astype(compute_dtype)
    w_qkv = jnp.concatenate([wq, wk, wv], axis=1).astype(compute_dtype)
    wo_c = wo.astype(compute_dtype)
    bias_f32 = pos_bias.astype(jnp.float32)

    # --- fused QKV projection (one wide, lane-dense matmul) ------------------
    qkv = _qkv_projection(x_c, w_qkv, compute_dtype, tq)   # (bs, qlen, 3*inner)

    # wrapper-side layout plumbing: split tensors and heads
    q, k, v = jnp.split(qkv, 3, axis=-1)

    def split_heads(t):
        return t.reshape(bs, qlen, n_heads, d_kv).transpose(0, 2, 1, 3)

    qh, kh, vh = (split_heads(t) for t in (q, k, v))        # (bs, H, qlen, d_kv)

    # --- fused attention + output projection ----------------------------------
    out = _attention_oproj(qh, kh, vh, bias_f32, wo_c, x.dtype, tq)
    return out


# ----------------------------------------------------------------------------
# T5 relative position bias (glue, plain JAX: integer bucketing + embedding)
# ----------------------------------------------------------------------------
def _relative_position_bucket(relative_position, bidirectional=True,
                              num_buckets=32, max_distance=128):
    ret = jnp.zeros_like(relative_position)
    n = -relative_position
    if bidirectional:
        num_buckets //= 2
        ret = ret + (n < 0).astype(jnp.int32) * num_buckets
        n = jnp.abs(n)
    else:
        n = jnp.maximum(n, jnp.zeros_like(n))
    max_exact = num_buckets // 2
    is_small = n < max_exact
    n_safe = jnp.maximum(n, 1)  # avoid log(0); masked by is_small anyway
    val_if_large = max_exact + (
        jnp.log(n_safe.astype(jnp.float32) / max_exact)
        / math.log(max_distance / max_exact)
        * (num_buckets - max_exact)
    ).astype(jnp.int32)
    val_if_large = jnp.minimum(val_if_large, num_buckets - 1)
    ret = ret + jnp.where(is_small, n, val_if_large)
    return ret


def compute_bias(rel_emb, qlen, klen, bidirectional, num_buckets):
    context_position = jnp.arange(qlen, dtype=jnp.int32)[:, None]
    memory_position = jnp.arange(klen, dtype=jnp.int32)[None, :]
    relative_position = memory_position - context_position
    rp_bucket = _relative_position_bucket(
        relative_position, bidirectional=bidirectional, num_buckets=num_buckets)
    values = rel_emb[rp_bucket]                  # (qlen, klen, n_heads)
    values = jnp.transpose(values, (2, 0, 1))    # (n_heads, qlen, klen)
    return values


# ----------------------------------------------------------------------------
# Pure-JAX (f32) reference for correctness check
# ----------------------------------------------------------------------------
def t5_attention_ref(x, wq, wk, wv, wo, pos_bias, n_heads, d_kv):
    bs, qlen, d_model = x.shape

    def shape_heads(t):
        return t.reshape(bs, qlen, n_heads, d_kv).transpose(0, 2, 1, 3)

    q = shape_heads(x @ wq)
    k = shape_heads(x @ wk)
    v = shape_heads(x @ wv)
    scores = jnp.einsum('bhqd,bhkd->bhqk', q, k) + pos_bias[None]
    weights = jax.nn.softmax(scores.astype(jnp.float32), axis=-1)
    ctx = jnp.einsum('bhqk,bhkd->bhqd', weights, v)
    ctx = ctx.transpose(0, 2, 1, 3).reshape(bs, qlen, n_heads * d_kv)
    return ctx @ wo


if __name__ == "__main__":
    # Small T5-ish config
    BS, QLEN = 2, 8
    D_MODEL, D_KV, N_HEADS = 32, 8, 4
    INNER = N_HEADS * D_KV
    NUM_BUCKETS = 32
    IS_BIDIRECTIONAL = True  # encoder self-attention

    key = jax.random.PRNGKey(0)
    kx, kq, kk, kv, ko, kb = jax.random.split(key, 6)

    x = jax.random.normal(kx, (BS, QLEN, D_MODEL), dtype=jnp.float32)
    # weights stored (in, out) == PyTorch nn.Linear weight transposed
    wq = jax.random.normal(kq, (D_MODEL, INNER), dtype=jnp.float32) * 0.02
    wk = jax.random.normal(kk, (D_MODEL, INNER), dtype=jnp.float32) * 0.02
    wv = jax.random.normal(kv, (D_MODEL, INNER), dtype=jnp.float32) * 0.02
    wo = jax.random.normal(ko, (INNER, D_MODEL), dtype=jnp.float32) * 0.02
    rel_emb = jax.random.normal(kb, (NUM_BUCKETS, N_HEADS), dtype=jnp.float32) * 0.02

    # position bias (returned alongside context by the PyTorch module)
    pos_bias = compute_bias(rel_emb, QLEN, QLEN, IS_BIDIRECTIONAL, NUM_BUCKETS)

    out = t5_attention_pallas(x, wq, wk, wv, wo, pos_bias, N_HEADS)
    out = jax.block_until_ready(out)

    ref = t5_attention_ref(x, wq, wk, wv, wo, pos_bias, N_HEADS, D_KV)
    assert out.shape == (BS, QLEN, D_MODEL)
    # tolerance relaxed vs the f32 reference because matmul operands are bf16
    assert jnp.allclose(out, ref, atol=1e-2, rtol=2e-2), "mismatch vs reference"

    # TODO(synk): dropout (p>0 in training), LoRA/IA3 adapter branches, attention
    # mask / head_mask, and decoder past_key_value caching are not modeled
    # (eval-mode encoder self-attention path only).
    print("KERNEL_OK")
</pallas_src>

<mosaic_0001>
module attributes {stable_mosaic.version = 11 : i64} {
  func.func @_qkv_proj_kernel(%arg0: i32, %arg1: i32, %arg2: memref<1x8x32xbf16, #tpu.memory_space<vmem>>, %arg3: memref<32x96xbf16, #tpu.memory_space<vmem>>, %arg4: memref<1x8x96xbf16, #tpu.memory_space<vmem>>) attributes {dimension_semantics = [#tpu.dimension_semantics<parallel>, #tpu.dimension_semantics<parallel>], iteration_bounds = array<i64: 2, 1>, scalar_prefetch = 0 : i64, scratch_operands = 0 : i64, tpu.core_type = #tpu.core_type<tc>, window_params = [{transform_indices = @transform_0, window_bounds = array<i64: 1, 8, 32>}, {pipeline_mode = #tpu.pipeline_mode<synchronous>, transform_indices = @transform_1, window_bounds = array<i64: 32, 96>}, {transform_indices = @transform_2, window_bounds = array<i64: 1, 8, 96>}]} {
    %c0 = arith.constant 0 : index
    %c0_0 = arith.constant 0 : index
    %c0_1 = arith.constant 0 : index
    %0 = vector.load %arg2[%c0, %c0_0, %c0_1] : memref<1x8x32xbf16, #tpu.memory_space<vmem>>, vector<1x8x32xbf16>
    %1 = vector.shape_cast %0 : vector<1x8x32xbf16> to vector<8x32xbf16>
    %c0_2 = arith.constant 0 : index
    %c0_3 = arith.constant 0 : index
    %2 = vector.load %arg3[%c0_2, %c0_3] : memref<32x96xbf16, #tpu.memory_space<vmem>>, vector<32x96xbf16>
    %cst = arith.constant dense<0.000000e+00> : vector<8x96xf32>
    %3 = tpu.matmul %1, %2, %cst {dimension_numbers = #tpu.dot_dimension_numbers<[1], [0], [0], [1], [0, 0, 1, 1], [], []>} : vector<8x32xbf16>, vector<32x96xbf16>, vector<8x96xf32> -> vector<8x96xf32>
    %4 = arith.truncf %3 : vector<8x96xf32> to vector<8x96xbf16>
    %c0_4 = arith.constant 0 : index
    %c0_5 = arith.constant 0 : index
    %c0_6 = arith.constant 0 : index
    %5 = vector.load %arg4[%c0_4, %c0_5, %c0_6] : memref<1x8x96xbf16, #tpu.memory_space<vmem>>, vector<1x8x96xbf16>
    %6 = vector.shape_cast %5 : vector<1x8x96xbf16> to vector<8x96xbf16>
    %7 = vector.shape_cast %4 : vector<8x96xbf16> to vector<1x8x96xbf16>
    tpu.vector_store %arg4[%c0_4, %c0_5, %c0_6], %7 {strides = array<i32>} : memref<1x8x96xbf16, #tpu.memory_space<vmem>>, vector<1x8x96xbf16>,
    return
  }
  func.func @transform_0(%arg0: i32, %arg1: i32) -> (i32, i32, i32) {
    %c0_i32 = arith.constant 0 : i32
    %c0_i32_0 = arith.constant 0 : i32
    return %arg0, %arg1, %c0_i32 : i32, i32, i32
  }
  func.func @transform_1(%arg0: i32, %arg1: i32) -> (i32, i32) {
    %c0_i32 = arith.constant 0 : i32
    %c0_i32_0 = arith.constant 0 : i32
    %c0_i32_1 = arith.constant 0 : i32
    return %c0_i32, %c0_i32_0 : i32, i32
  }
  func.func @transform_2(%arg0: i32, %arg1: i32) -> (i32, i32, i32) {
    %c0_i32 = arith.constant 0 : i32
    %c0_i32_0 = arith.constant 0 : i32
    return %arg0, %arg1, %c0_i32 : i32, i32, i32
  }
}

</mosaic_0001>

<llo_original>
// kernel: tpu_custom_call.1
$region0: #{tpu_custom_call.1}
  #allocation0 [shape = 'u32[]', space=smem, size = 0x4, offset = 0x4, fixed_abs, tag = 'smem constant byte address 0x4 - core index']
  #allocation1 [shape = 'u32[144,128]{1,0:T(1,128)}', space=vmem, size = 0x12000, scoped, tag = 'internal scratch']
  %s0 = inlined_call_operand.hbm [shape: bf16[2,8,32], index: 0, kind: input, shape index: {}]
  %s1 = inlined_call_operand.hbm [shape: bf16[32,96], index: 1, kind: input, shape index: {}]
  %s2 = inlined_call_operand.hbm [shape: bf16[2,8,96], index: 2, kind: output, shape index: {}]
  %s3 = sld [smem:[#allocation0]]
  $region49: #{tpu_custom_call.1} parent=0
    _
  %s5 = ssub.s32 1, %s3
  %s6 = scalar_select 0, %s5, %s3
  $region1: #{tpu_custom_call.1} parent=0
    #allocation2 [shape = 'u8[4096]{0}', space=vmem, size = 0x1000, scoped, tag = 'input window, operand 0']
    #allocation3 [shape = 's32[2]{0}', space=sflag, size = 0x8, scoped, tag = 'scoped memory for tpu_custom_call.1']
    #allocation4 [shape = 's32[2]{0}', space=sflag, size = 0x8, scoped, tag = 'scoped memory for tpu_custom_call.1']
    #allocation5 [shape = 'u8[8192]{0}', space=vmem, size = 0x2000, scoped, tag = 'input window, operand 1, single buffered']
    #allocation6 [shape = 's32[1]{0}', space=sflag, size = 0x4, scoped, tag = 'scoped memory for tpu_custom_call.1']
    #allocation7 [shape = 'u8[4096]{0}', space=vmem, size = 0x1000, scoped, tag = 'output window, operand 0']
    %7 = vsyncpa [#allocation3], 0
    %s8 = scalar_lea.sflag [#allocation3], 1
    %9 = vsyncpa %s8, 0
    %10 = vsyncpa [#allocation6], 0
    %11 = vsyncpa [#allocation4], 0
    %s12 = scalar_lea.sflag [#allocation4], 1
    %13 = vsyncpa %s12, 0
    loop: start=0, step=1, limit=4
    $region2: #{tpu_custom_call.1} parent=1 // loop_pre_header
      _
    $region3: #{tpu_custom_call.1} parent=1 // loop_header
      %s15 = sphi 0, %s19
      %p16 = scmp.ge.s32.totalorder %s15, 4
      %s22 = sphi 0, %s34
      %s23 = sphi 0, %s30
      %s24 = sphi 0, %s22
      %s25 = sphi 0, %s23
      %s26 = sphi 0, %s24
      %s27 = sphi 0, %s25
      %s39 = sphi 0, %s41
      %s42 = sphi 0, %s39
      %s43 = sphi 0, %s42
      %s59 = sphi 0, %s43
      %s63 = sphi 0, %s63
      %s65 = sphi 0, %s63
      %s66 = sphi 0, %s65
      %s80 = sphi 0, %s66
      %s88 = sphi 0, %s90
      %s91 = sphi 0, %s88
      %s92 = sphi 0, %s91
      %s108 = sphi 0, %s92
    $region4: #{tpu_custom_call.1} parent=1 // loop_header_branch
      %18 = sbr.rel (%p16) target = $region8
    $region5: #{tpu_custom_call.1} parent=1 // loop_body
      %s20 = ssub.s32 %s15, 1
      %s21 = ssub.s32 %s15, 2
      %s28 = sadd.s32 1, %s23
      %p29 = scmp.ge.s32.totalorder %s28, 1
      %s30 = scalar_select %p29, 0, %s28
      %s31 = sadd.s32 1, %s22
      %s32 = scalar_select %p29, %s31, %s22
      %p33 = scmp.ge.s32.totalorder %s32, 2
      %s34 = scalar_select %p33, 0, %s32
      %s35 = ssub.s32 %s22, %s34
      %s36 = ssub.s32 %s23, %s30
      %s37 = sor.u32 %s35, %s36
      %p38 = scmp.eq.s32.totalorder %s37, 0
      %s40 = sadd.s32 %s39, 1
      %s41 = scalar_select %p38, %s39, %s40
      %p44 = pneg %p38
      %p45 = scmp.eq.s32.totalorder %s15, 1
      %p46 = por %p44, %p45
      %p47 = scmp.ne.s32.totalorder %s39, %s42
      %p48 = scmp.eq.s32.totalorder %s15, 0
      %p49 = por %p47, %p48
      %p50 = scmp.ne.s32.totalorder %s39, %s42
      %p51 = scmp.eq.s32.totalorder %s20, 1
      %p52 = por %p50, %p51
      %p53 = scmp.ne.s32.totalorder %s42, %s43
      %p54 = scmp.eq.s32.totalorder %s20, 0
      %p55 = por %p53, %p54
      %p56 = scmp.ne.s32.totalorder %s42, %s43
      %p57 = scmp.eq.s32.totalorder %s21, 1
      %p58 = por %p56, %p57
      %p60 = scmp.ne.s32.totalorder %s43, %s59
      %p61 = scmp.eq.s32.totalorder %s21, 0
      %p62 = por %p60, %p61
      %s64 = sadd.s32 %s63, 1
      %p67 = scmp.eq.s32.totalorder %s15, 1
      %p68 = scmp.ne.s32.totalorder %s63, %s65
      %p69 = scmp.eq.s32.totalorder %s15, 0
      %p70 = por %p68, %p69
      %p71 = scmp.ne.s32.totalorder %s63, %s65
      %p72 = scmp.eq.s32.totalorder %s20, 1
      %p73 = por %p71, %p72
      %p74 = scmp.ne.s32.totalorder %s65, %s66
      %p75 = scmp.eq.s32.totalorder %s20, 0
      %p76 = por %p74, %p75
      %p77 = scmp.ne.s32.totalorder %s65, %s66
      %p78 = scmp.eq.s32.totalorder %s21, 1
      %p79 = por %p77, %p78
      %p81 = scmp.ne.s32.totalorder %s66, %s80
      %p82 = scmp.eq.s32.totalorder %s21, 0
      %p83 = por %p81, %p82
      %s84 = ssub.s32 %s22, %s34
      %s85 = ssub.s32 %s23, %s30
      %s86 = sor.u32 %s84, %s85
      %p87 = scmp.eq.s32.totalorder %s86, 0
      %s89 = sadd.s32 %s88, 1
      %s90 = scalar_select %p87, %s88, %s89
      %p93 = pneg %p87
      %p94 = scmp.eq.s32.totalorder %s15, 1
      %p95 = por %p93, %p94
      %p96 = scmp.ne.s32.totalorder %s88, %s91
      %p97 = scmp.eq.s32.totalorder %s15, 0
      %p98 = por %p96, %p97
      %p99 = scmp.ne.s32.totalorder %s88, %s91
      %p100 = scmp.eq.s32.totalorder %s20, 1
      %p101 = por %p99, %p100
      %p102 = scmp.ne.s32.totalorder %s91, %s92
      %p103 = scmp.eq.s32.totalorder %s20, 0
      %p104 = por %p102, %p103
      %p105 = scmp.ne.s32.totalorder %s91, %s92
      %p106 = scmp.eq.s32.totalorder %s21, 1
      %p107 = por %p105, %p106
      %p109 = scmp.ne.s32.totalorder %s92, %s108
      %p110 = scmp.eq.s32.totalorder %s21, 0
      %p111 = por %p109, %p110
      %p112 = scmp.le.s32.totalorder 1, %s15
      %p113 = scmp.lt.s32.totalorder %s15, 3
      %p114 = pnand %p112, %p113
      %p115 = pneg %p114
      // Predicated region
      $region9: #{tpu_custom_call.1} parent=5 // pred_check
        _
      $region10: #{tpu_custom_call.1} parent=5 // pred_check_branch
        %117 = sbr.rel (%p114) target = $region12
      $region11: #{tpu_custom_call.1} parent=5 // pred_region
        %s118 = ssub.s32 %s15, 1
        // Predicated region
        $region13: #{tpu_custom_call.1} parent=11 // pred_check
          %p119 = pneg %p76
        $region14: #{tpu_custom_call.1} parent=11 // pred_check_branch
          %121 = sbr.rel (%p119) target = $region16
        $region15: #{tpu_custom_call.1} parent=11 // pred_region
          %s123 = ssub.s32 256, 256
          %124 = vsyncadd [#allocation6], %s123
          %s125 = sshll.u32 [#allocation5], 4
          %s126 = int_to_ptr.vmem [resolvable:$true] %s125
          %131 = dma.hbm_to_vmem [thread:$0]  %s1, 256, %s126, [#allocation6], 64, 64, 4
        $region16: #{tpu_custom_call.1} parent=11 // pred_fallthru
          _
      $region12: #{tpu_custom_call.1} parent=5 // pred_fallthru
        _
      %p132 = scmp.lt.s32.totalorder %s15, 2
      // Predicated region
      $region17: #{tpu_custom_call.1} parent=5 // pred_check
        %p133 = pneg %p132
      $region18: #{tpu_custom_call.1} parent=5 // pred_check_branch
        %135 = sbr.rel (%p133) target = $region20
      $region19: #{tpu_custom_call.1} parent=5 // pred_region
        // Predicated region
        $region21: #{tpu_custom_call.1} parent=19 // pred_check
          %p136 = pneg %p49
        $region22: #{tpu_custom_call.1} parent=19 // pred_check_branch
          %138 = sbr.rel (%p136) target = $region24
        $region23: #{tpu_custom_call.1} parent=19 // pred_region
          %s139 = sand.u32 %s39, 1
          %s140 = scalar_lea.sflag [#allocation3], %s139
          %s141 = sand.u32 %s39, 1
          %s142 = smul.addr %s141, 4
          %s143 = scalar_lea.vmem [#allocation2], %s142
          %s145 = ssub.s32 64, 64
          %146 = vsyncadd %s140, %s145
          %s147 = sadd.s32 %s23, %s22
          %s148 = smul.addr %s147, 64
          %s149 = scalar_lea.hbm %s0, %s148
          %s151 = sshll.u32 %s143, 4
          %s152 = int_to_ptr.vmem [resolvable:$true] %s151
          %154 = dma.hbm_to_vmem [thread:$0]  %s149, 64, %s152, %s140
        $region24: #{tpu_custom_call.1} parent=19 // pred_fallthru
          _
      $region20: #{tpu_custom_call.1} parent=5 // pred_fallthru
        _
      %p155 = scmp.le.s32.totalorder 1, %s15
      %p156 = scmp.lt.s32.totalorder %s15, 3
      %p157 = pnand %p155, %p156
      %p158 = pneg %p157
      // Predicated region
      $region25: #{tpu_custom_call.1} parent=5 // pred_check
        _
      $region26: #{tpu_custom_call.1} parent=5 // pred_check_branch
        %160 = sbr.rel (%p157) target = $region28
      $region27: #{tpu_custom_call.1} parent=5 // pred_region
        %s161 = ssub.s32 %s15, 1
        %s162 = sand.u32 %s42, 1
        %s163 = scalar_lea.sflag [#allocation3], %s162
        %s164 = sand.u32 %s42, 1
        %s165 = smul.addr %s164, 4
        %s166 = scalar_lea.vmem [#allocation2], %s165
        // Predicated region
        $region29: #{tpu_custom_call.1} parent=27 // pred_check
          %p167 = pneg %p55
        $region30: #{tpu_custom_call.1} parent=27 // pred_check_branch
          %169 = sbr.rel (%p167) target = $region32
        $region31: #{tpu_custom_call.1} parent=27 // pred_region
          %170 = dma.done %s163, 64
        $region32: #{tpu_custom_call.1} parent=27 // pred_fallthru
          _
        // Predicated region
        $region33: #{tpu_custom_call.1} parent=27 // pred_check
          %p171 = pneg %p76
        $region34: #{tpu_custom_call.1} parent=27 // pred_check_branch
          %173 = sbr.rel (%p171) target = $region36
        $region35: #{tpu_custom_call.1} parent=27 // pred_region
          %174 = dma.done [#allocation6], 256
        $region36: #{tpu_custom_call.1} parent=27 // pred_fallthru
          _
        %s175 = sand.u32 %s42, 1
        %s176 = scalar_lea.sflag [#allocation3], %s175
        %s177 = sand.u32 %s42, 1
        %s178 = smul.addr %s177, 4
        %s179 = scalar_lea.vmem [#allocation2], %s178
        %p180 = pneg %p55
        %p181 = pneg %p52
        %p182 = pneg %p76
        %p183 = pneg %p73
        %p184 = pneg %p104
        %p185 = pneg %p101
        %s186 = sand.u32 %s91, 1
        %s187 = scalar_lea.sflag [#allocation4], %s186
        %s188 = sand.u32 %s91, 1
        %s189 = smul.addr %s188, 4
        %s190 = scalar_lea.vmem [#allocation7], %s189
        %v192 = vld [vmem:[%s166] sm:$0xf]
        %v193 = vld [vmem:[#allocation5] sm:$0xf]
        %v194 = vld [vmem:[#allocation5 + $0x4] sm:$0xf]
        %v195 = vld [vmem:[#allocation5 + $0x8] sm:$0xf]
        %v196 = vld [vmem:[#allocation5 + $0xc] sm:$0xf]
        %v201 = vunpack.c.l.b16 %v193
        %v202 = vunpack.c.l.b16 %v194
        %v203 = vunpack.c.l.b16 %v195
        %v204 = vunpack.c.l.b16 %v196
        %v205 = vpack.c.b16 %v202, %v201
        %v206 = vpack.c.b16 %v204, %v203
        %vm209 = vcmask 261120
        %v211 = vsel %vm209, %v192, 0
        %213 = vmatprep.subr.bf16.mxu0 0
        %214 = vmatpush1.bf16.msra.mxu0 %v205
        %215 = vmatprep.subr.bf16.mxu0 0
        %216 = vmatpush1.bf16.msra.mxu0 %v206
        %217 = vmatprep.subr.bf16.mxu0 0
        %218 = vmatpush1.bf16.msra.mxu0 0
        %219 = vmatprep.subr.bf16.mxu0 0
        %220 = vmatpush1.bf16.msra.mxu0 0
        %221 = vmatprep.subr.bf16.mxu0 0
        %222 = vmatpush1.bf16.msra.mxu0 0
        %223 = vmatprep.subr.bf16.mxu0 0
        %224 = vmatpush1.bf16.msra.mxu0 0
        %225 = vmatprep.subr.bf16.mxu0 0
        %226 = vmatpush1.bf16.msra.mxu0 0
        %227 = vmatprep.subr.bf16.mxu0 0
        %228 = vmatpush1.bf16.msra.mxu0 0
        %229 = vmatprep.subr.bf16.mxu0 0
        %230 = vmatpush1.bf16.msra.mxu0 0
        %231 = vmatprep.subr.bf16.mxu0 0
        %232 = vmatpush1.bf16.msra.mxu0 0
        %233 = vmatprep.subr.bf16.mxu0 0
        %234 = vmatpush1.bf16.msra.mxu0 0
        %235 = vmatprep.subr.bf16.mxu0 0
        %236 = vmatpush1.bf16.msra.mxu0 0
        %237 = vmatprep.subr.bf16.mxu0 0
        %238 = vmatpush1.bf16.msra.mxu0 0
        %239 = vmatprep.subr.bf16.mxu0 0
        %240 = vmatpush1.bf16.msra.mxu0 0
        %241 = vmatprep.subr.bf16.mxu0 0
        %242 = vmatpush1.bf16.msra.mxu0 0
        %243 = vmatprep.subr.bf16.mxu0 0
        %244 = vmatpush1.bf16.msra.mxu0 0
        %245 = vmatprep.mubr.bf16.mxu0 0
        %246 = vmatmul.mubr.bf16.gmra.mrb[0].mxu0 %v211
        %v247 = vpop.f32.mrb[0].mxu0
        %v248 = vadd.f32 0.0, %v247
        %v249 = vpop.f32.mrb[0].mxu0
        %v250 = vpop.f32.mrb[0].mxu0
        %v251 = vpop.f32.mrb[0].mxu0
        %252 = vdwg.mxu0
        %v253 = vpack.c.bf16 %v248, %v248
        %vm254 = vcmask 781312
        %255 = vst.msk [vmem:[%s190] sm:$0xf] %vm254, %v253
        %s256 = sand.u32 %s91, 1
        %s257 = scalar_lea.sflag [#allocation4], %s256
        %s258 = sand.u32 %s91, 1
        %s259 = smul.addr %s258, 4
        %s260 = scalar_lea.vmem [#allocation7], %s259
        // Predicated region
        $region37: #{tpu_custom_call.1} parent=27 // pred_check
          %p261 = pneg %p101
        $region38: #{tpu_custom_call.1} parent=27 // pred_check_branch
          %263 = sbr.rel (%p261) target = $region40
        $region39: #{tpu_custom_call.1} parent=27 // pred_region
          %s265 = ssub.s32 64, 64
          %266 = vsyncadd %s257, %s265
          %s267 = sadd.s32 %s25, %s24
          %s268 = smul.addr %s267, 64
          %s269 = scalar_lea.hbm %s2, %s268
          %s271 = sshll.u32 %s260, 4
          %s272 = int_to_ptr.vmem [resolvable:$true] %s271
          %274 = dma.vmem_to_hbm [thread:$0]  %s272, 64, %s269, %s257
        $region40: #{tpu_custom_call.1} parent=27 // pred_fallthru
          _
      $region28: #{tpu_custom_call.1} parent=5 // pred_fallthru
        _
      %p275 = scmp.le.s32.totalorder 2, %s15
      // Predicated region
      $region41: #{tpu_custom_call.1} parent=5 // pred_check
        %p276 = pneg %p275
      $region42: #{tpu_custom_call.1} parent=5 // pred_check_branch
        %278 = sbr.rel (%p276) target = $region44
      $region43: #{tpu_custom_call.1} parent=5 // pred_region
        %s279 = ssub.s32 %s15, 2
        // Predicated region
        $region45: #{tpu_custom_call.1} parent=43 // pred_check
          %p280 = pneg %p107
        $region46: #{tpu_custom_call.1} parent=43 // pred_check_branch
          %282 = sbr.rel (%p280) target = $region48
        $region47: #{tpu_custom_call.1} parent=43 // pred_region
          %s283 = sand.u32 %s92, 1
          %s284 = scalar_lea.sflag [#allocation4], %s283
          %s285 = sand.u32 %s92, 1
          %s286 = smul.addr %s285, 4
          %s287 = scalar_lea.vmem [#allocation7], %s286
          %288 = dma.done %s284, 64
        $region48: #{tpu_custom_call.1} parent=43 // pred_fallthru
          _
      $region44: #{tpu_custom_call.1} parent=5 // pred_fallthru
        _
    $region6: #{tpu_custom_call.1} parent=1 // loop_footer
      %s19 = sadd.s32 1, %s15
    $region7: #{tpu_custom_call.1} parent=1 // loop_footer_branch
      %14 = sbr.rel target = $region3
    $region8: #{tpu_custom_call.1} parent=1 // loop_exit
      _
    %289 = vsyncpa [#allocation3], 1
    %s290 = scalar_lea.sflag [#allocation3], 1
    %291 = vsyncpa %s290, 1
    %292 = vsyncpa [#allocation6], 1
    %293 = vsyncpa [#allocation4], 1
    %s294 = scalar_lea.sflag [#allocation4], 1
    %295 = vsyncpa %s294, 1

</llo_original>
